<compile_context>
chip_gen: v7x
topology: tpu7x:2x2x1
jax: 0.10.0
libtpu: 0.0.40
codegen_flags: <defaults>
</compile_context>

<pallas_src>
import jax
import jax.numpy as jnp
from jax.experimental import pallas as pl
from jax.experimental.pallas import tpu as pltpu

EMB_DIM = 32
HID_DIM = 32
VOCAB = 50


def gru_kernel(tok_ref, gi_table_ref, whh_ref, bhh_pad_ref, h_out_ref):
    """Whole GRU recurrence (embedding gather included) in one invocation.

    tok_ref      : (B, T)      int32, SMEM  token ids (assumed in [0, VOCAB))
    gi_table_ref : (VOCAB, 3H) f32,   VMEM  fused emb@W_ih^T + b_ih + [b_hr, b_hz, 0]
    whh_ref      : (H, 3H)     f32,   VMEM  W_hh^T
    bhh_pad_ref  : (1, 3H)     f32,   VMEM  [0, 0, b_hn]  (lane-aligned n-gate bias)
    h_out_ref    : (B, H)      f32,   VMEM  final hidden state
    """
    B, T = tok_ref.shape
    H = HID_DIM

    whh = whh_ref[...]          # (H, 3H) loop-invariant, stays in vregs
    bhh_pad = bhh_pad_ref[...]  # (1, 3H)

    def step(t, h_prev):
        # In-kernel embedding gather: one dynamic-row VMEM load per batch elem.
        rows = [gi_table_ref[pl.ds(tok_ref[b, t], 1), :] for b in range(B)]
        gi_t = jnp.concatenate(rows, axis=0)                            # (B, 3H)

        # TODO(synk): if the Mosaic dump ever shows the W_hh RHS re-pushed per
        # step, switch to explicit pltpu.matmul_push_rhs/acc_lhs/pop staging.
        gh = jnp.dot(h_prev, whh, preferred_element_type=jnp.float32)   # (B, 3H)
        gh_b = gh + bhh_pad        # full-width, lane-aligned bias add
        s = gi_t + gh_b            # full-width add; r/z parts are exact

        r = jax.nn.sigmoid(s[:, 0:H])
        z = jax.nn.sigmoid(s[:, H:2 * H])
        n = jnp.tanh(gi_t[:, 2 * H:3 * H] + r * gh_b[:, 2 * H:3 * H])
        return n + z * (h_prev - n)          # == (1 - z) * n + z * h_prev

    h0 = jnp.zeros((B, H), jnp.float32)
    h_final = jax.lax.fori_loop(0, T, step, h0, unroll=True)
    h_out_ref[...] = h_final                 # single store at the end


def prepare_encoder(params):
    """Token-independent precompute; run once at param-init time, not per call.

      gi_table[v] = emb[v] @ W_ih^T + b_ih + [b_hr, b_hz, 0]
    (the n-gate hidden bias stays inside the kernel since it is gated by r)
    """
    emb_table, w_ih, w_hh, b_ih, b_hh = params
    H = HID_DIM
    bhh_rz = jnp.concatenate([b_hh[: 2 * H], jnp.zeros((H,), jnp.float32)])
    gi_table = emb_table @ w_ih.T + b_ih + bhh_rz                      # (VOCAB, 3H)
    whh_t = w_hh.T                                                     # (H, 3H)
    bhh_pad = jnp.concatenate(
        [jnp.zeros((2 * H,), jnp.float32), b_hh[2 * H:]]).reshape(1, 3 * H)
    return gi_table, whh_t, bhh_pad


def encoder_forward(tokens, enc_params):
    """tokens: (B, T) int32.  Returns final GRU hidden state (B, HID_DIM) f32."""
    gi_table, whh_t, bhh_pad = enc_params
    B, T = tokens.shape
    H = HID_DIM

    smem = pl.BlockSpec(memory_space=pltpu.MemorySpace.SMEM)
    vmem = pl.BlockSpec(memory_space=pltpu.MemorySpace.VMEM)
    h = pl.pallas_call(
        gru_kernel,
        out_shape=jax.ShapeDtypeStruct((B, H), jnp.float32),
        in_specs=[smem, vmem, vmem, vmem],
        out_specs=vmem,
    )(tokens, gi_table, whh_t, bhh_pad)
    return h


def init_params(key):
    """Deterministic init mimicking PyTorch shapes: emb ~ N(0,1), GRU ~ U(-k,k)."""
    k_emb, k_wih, k_whh, k_bih, k_bhh = jax.random.split(key, 5)
    emb_table = jax.random.normal(k_emb, (VOCAB, EMB_DIM), jnp.float32)
    k = 1.0 / jnp.sqrt(jnp.float32(HID_DIM))
    w_ih = jax.random.uniform(k_wih, (3 * HID_DIM, EMB_DIM), jnp.float32, -k, k)
    w_hh = jax.random.uniform(k_whh, (3 * HID_DIM, HID_DIM), jnp.float32, -k, k)
    b_ih = jax.random.uniform(k_bih, (3 * HID_DIM,), jnp.float32, -k, k)
    b_hh = jax.random.uniform(k_bhh, (3 * HID_DIM,), jnp.float32, -k, k)
    return emb_table, w_ih, w_hh, b_ih, b_hh


def encoder_reference(tokens, params):
    """Pure-JAX reference (lax.scan) matching torch.nn.GRU gate math."""
    emb_table, w_ih, w_hh, b_ih, b_hh = params
    x_emb = jnp.take(emb_table, tokens, axis=0)            # (B, T, EMB)
    B = tokens.shape[0]
    H = HID_DIM

    def step(h_prev, x_t):
        gi = x_t @ w_ih.T + b_ih
        gh = h_prev @ w_hh.T + b_hh
        r = jax.nn.sigmoid(gi[:, :H] + gh[:, :H])
        z = jax.nn.sigmoid(gi[:, H:2 * H] + gh[:, H:2 * H])
        n = jnp.tanh(gi[:, 2 * H:] + r * gh[:, 2 * H:])
        h_new = (1.0 - z) * n + z * h_prev
        return h_new, None

    h0 = jnp.zeros((B, H), jnp.float32)
    h_final, _ = jax.lax.scan(step, h0, jnp.transpose(x_emb, (1, 0, 2)))
    return h_final


if __name__ == "__main__":
    key = jax.random.PRNGKey(0)
    params = init_params(key)
    enc_params = prepare_encoder(params)        # token-independent, cached

    B, T = 2, 8
    tokens = jax.random.randint(jax.random.PRNGKey(1), (B, T), 0, VOCAB, jnp.int32)

    h = encoder_forward(tokens, enc_params)
    jax.block_until_ready(h)

    h_ref = encoder_reference(tokens, params)
    assert h.shape == (B, HID_DIM)
    assert jnp.allclose(h, h_ref, atol=1e-5, rtol=1e-5), "mismatch vs JAX reference"

    print("KERNEL_OK")
</pallas_src>

<mosaic_0001>
module attributes {stable_mosaic.version = 11 : i64} {
  func.func @gru_kernel(%arg0: memref<2x8xi32, #tpu.memory_space<smem>>, %arg1: memref<50x96xf32, #tpu.memory_space<vmem>>, %arg2: memref<32x96xf32, #tpu.memory_space<vmem>>, %arg3: memref<1x96xf32, #tpu.memory_space<vmem>>, %arg4: memref<2x32xf32, #tpu.memory_space<vmem>>) attributes {dimension_semantics = [], scalar_prefetch = 0 : i64, scratch_operands = 0 : i64, tpu.core_type = #tpu.core_type<tc>} {
    %c0 = arith.constant 0 : index
    %c0_0 = arith.constant 0 : index
    %0 = vector.load %arg2[%c0, %c0_0] : memref<32x96xf32, #tpu.memory_space<vmem>>, vector<32x96xf32>
    %c0_1 = arith.constant 0 : index
    %c0_2 = arith.constant 0 : index
    %1 = vector.load %arg3[%c0_1, %c0_2] : memref<1x96xf32, #tpu.memory_space<vmem>>, vector<1x96xf32>
    %cst = arith.constant 0.000000e+00 : f32
    %2 = vector.broadcast %cst : f32 to vector<2x32xf32>
    %c0_i32 = arith.constant 0 : i32
    %c0_3 = arith.constant 0 : index
    %3 = arith.index_cast %c0_i32 : i32 to index
    %4 = memref.load %arg0[%c0_3, %3] : memref<2x8xi32, #tpu.memory_space<smem>>
    %5 = arith.index_cast %4 : i32 to index
    %c0_4 = arith.constant 0 : index
    %6 = vector.load %arg1[%5, %c0_4] : memref<50x96xf32, #tpu.memory_space<vmem>>, vector<1x96xf32>
    %c1 = arith.constant 1 : index
    %7 = arith.index_cast %c0_i32 : i32 to index
    %8 = memref.load %arg0[%c1, %7] : memref<2x8xi32, #tpu.memory_space<smem>>
    %9 = arith.index_cast %8 : i32 to index
    %c0_5 = arith.constant 0 : index
    %10 = vector.load %arg1[%9, %c0_5] : memref<50x96xf32, #tpu.memory_space<vmem>>, vector<1x96xf32>
    %11 = tpu.concatenate %6, %10 in 0 : vector<1x96xf32>, vector<1x96xf32> -> vector<2x96xf32>
    %cst_6 = arith.constant dense<0.000000e+00> : vector<2x96xf32>
    %12 = tpu.matmul %2, %0, %cst_6 {dimension_numbers = #tpu.dot_dimension_numbers<[1], [0], [0], [1], [0, 0, 1, 1], [], []>} : vector<2x32xf32>, vector<32x96xf32>, vector<2x96xf32> -> vector<2x96xf32>
    %13 = vector.broadcast %1 : vector<1x96xf32> to vector<2x96xf32>
    %14 = arith.addf %12, %13 : vector<2x96xf32>
    %15 = arith.addf %11, %14 : vector<2x96xf32>
    %16 = vector.extract_strided_slice %15 {offsets = [0, 0], sizes = [2, 32], strides = [1, 1]} : vector<2x96xf32> to vector<2x32xf32>
    %17 = arith.negf %16 : vector<2x32xf32>
    %18 = math.exp %17 : vector<2x32xf32>
    %cst_7 = arith.constant 1.000000e+00 : f32
    %19 = vector.broadcast %cst_7 : f32 to vector<2x32xf32>
    %20 = arith.addf %19, %18 : vector<2x32xf32>
    %21 = arith.divf %19, %20 : vector<2x32xf32>
    %22 = vector.extract_strided_slice %15 {offsets = [0, 32], sizes = [2, 32], strides = [1, 1]} : vector<2x96xf32> to vector<2x32xf32>
    %23 = arith.negf %22 : vector<2x32xf32>
    %24 = math.exp %23 : vector<2x32xf32>
    %cst_8 = arith.constant 1.000000e+00 : f32
    %25 = vector.broadcast %cst_8 : f32 to vector<2x32xf32>
    %26 = arith.addf %25, %24 : vector<2x32xf32>
    %27 = arith.divf %25, %26 : vector<2x32xf32>
    %28 = vector.extract_strided_slice %11 {offsets = [0, 64], sizes = [2, 32], strides = [1, 1]} : vector<2x96xf32> to vector<2x32xf32>
    %29 = vector.extract_strided_slice %14 {offsets = [0, 64], sizes = [2, 32], strides = [1, 1]} : vector<2x96xf32> to vector<2x32xf32>
    %30 = arith.mulf %21, %29 : vector<2x32xf32>
    %31 = arith.addf %28, %30 : vector<2x32xf32>
    %32 = math.tanh %31 : vector<2x32xf32>
    %33 = arith.subf %2, %32 : vector<2x32xf32>
    %34 = arith.mulf %27, %33 : vector<2x32xf32>
    %35 = arith.addf %32, %34 : vector<2x32xf32>
    %c1_i32 = arith.constant 1 : i32
    %c0_9 = arith.constant 0 : index
    %36 = arith.index_cast %c1_i32 : i32 to index
    %37 = memref.load %arg0[%c0_9, %36] : memref<2x8xi32, #tpu.memory_space<smem>>
    %38 = arith.index_cast %37 : i32 to index
    %c0_10 = arith.constant 0 : index
    %39 = vector.load %arg1[%38, %c0_10] : memref<50x96xf32, #tpu.memory_space<vmem>>, vector<1x96xf32>
    %c1_11 = arith.constant 1 : index
    %40 = arith.index_cast %c1_i32 : i32 to index
    %41 = memref.load %arg0[%c1_11, %40] : memref<2x8xi32, #tpu.memory_space<smem>>
    %42 = arith.index_cast %41 : i32 to index
    %c0_12 = arith.constant 0 : index
    %43 = vector.load %arg1[%42, %c0_12] : memref<50x96xf32, #tpu.memory_space<vmem>>, vector<1x96xf32>
    %44 = tpu.concatenate %39, %43 in 0 : vector<1x96xf32>, vector<1x96xf32> -> vector<2x96xf32>
    %cst_13 = arith.constant dense<0.000000e+00> : vector<2x96xf32>
    %45 = tpu.matmul %35, %0, %cst_13 {dimension_numbers = #tpu.dot_dimension_numbers<[1], [0], [0], [1], [0, 0, 1, 1], [], []>} : vector<2x32xf32>, vector<32x96xf32>, vector<2x96xf32> -> vector<2x96xf32>
    %46 = vector.broadcast %1 : vector<1x96xf32> to vector<2x96xf32>
    %47 = arith.addf %45, %46 : vector<2x96xf32>
    %48 = arith.addf %44, %47 : vector<2x96xf32>
    %49 = vector.extract_strided_slice %48 {offsets = [0, 0], sizes = [2, 32], strides = [1, 1]} : vector<2x96xf32> to vector<2x32xf32>
    %50 = arith.negf %49 : vector<2x32xf32>
    %51 = math.exp %50 : vector<2x32xf32>
    %cst_14 = arith.constant 1.000000e+00 : f32
    %52 = vector.broadcast %cst_14 : f32 to vector<2x32xf32>
    %53 = arith.addf %52, %51 : vector<2x32xf32>
    %54 = arith.divf %52, %53 : vector<2x32xf32>
    %55 = vector.extract_strided_slice %48 {offsets = [0, 32], sizes = [2, 32], strides = [1, 1]} : vector<2x96xf32> to vector<2x32xf32>
    %56 = arith.negf %55 : vector<2x32xf32>
    %57 = math.exp %56 : vector<2x32xf32>
    %cst_15 = arith.constant 1.000000e+00 : f32
    %58 = vector.broadcast %cst_15 : f32 to vector<2x32xf32>
    %59 = arith.addf %58, %57 : vector<2x32xf32>
    %60 = arith.divf %58, %59 : vector<2x32xf32>
    %61 = vector.extract_strided_slice %44 {offsets = [0, 64], sizes = [2, 32], strides = [1, 1]} : vector<2x96xf32> to vector<2x32xf32>
    %62 = vector.extract_strided_slice %47 {offsets = [0, 64], sizes = [2, 32], strides = [1, 1]} : vector<2x96xf32> to vector<2x32xf32>
    %63 = arith.mulf %54, %62 : vector<2x32xf32>
    %64 = arith.addf %61, %63 : vector<2x32xf32>
    %65 = math.tanh %64 : vector<2x32xf32>
    %66 = arith.subf %35, %65 : vector<2x32xf32>
    %67 = arith.mulf %60, %66 : vector<2x32xf32>
    %68 = arith.addf %65, %67 : vector<2x32xf32>
    %c2_i32 = arith.constant 2 : i32
    %c0_16 = arith.constant 0 : index
    %69 = arith.index_cast %c2_i32 : i32 to index
    %70 = memref.load %arg0[%c0_16, %69] : memref<2x8xi32, #tpu.memory_space<smem>>
    %71 = arith.index_cast %70 : i32 to index
    %c0_17 = arith.constant 0 : index
    %72 = vector.load %arg1[%71, %c0_17] : memref<50x96xf32, #tpu.memory_space<vmem>>, vector<1x96xf32>
    %c1_18 = arith.constant 1 : index
    %73 = arith.index_cast %c2_i32 : i32 to index
    %74 = memref.load %arg0[%c1_18, %73] : memref<2x8xi32, #tpu.memory_space<smem>>
    %75 = arith.index_cast %74 : i32 to index
    %c0_19 = arith.constant 0 : index
    %76 = vector.load %arg1[%75, %c0_19] : memref<50x96xf32, #tpu.memory_space<vmem>>, vector<1x96xf32>
    %77 = tpu.concatenate %72, %76 in 0 : vector<1x96xf32>, vector<1x96xf32> -> vector<2x96xf32>
    %cst_20 = arith.constant dense<0.000000e+00> : vector<2x96xf32>
    %78 = tpu.matmul %68, %0, %cst_20 {dimension_numbers = #tpu.dot_dimension_numbers<[1], [0], [0], [1], [0, 0, 1, 1], [], []>} : vector<2x32xf32>, vector<32x96xf32>, vector<2x96xf32> -> vector<2x96xf32>
    %79 = vector.broadcast %1 : vector<1x96xf32> to vector<2x96xf32>
    %80 = arith.addf %78, %79 : vector<2x96xf32>
    %81 = arith.addf %77, %80 : vector<2x96xf32>
    %82 = vector.extract_strided_slice %81 {offsets = [0, 0], sizes = [2, 32], strides = [1, 1]} : vector<2x96xf32> to vector<2x32xf32>
    %83 = arith.negf %82 : vector<2x32xf32>
    %84 = math.exp %83 : vector<2x32xf32>
    %cst_21 = arith.constant 1.000000e+00 : f32
    %85 = vector.broadcast %cst_21 : f32 to vector<2x32xf32>
    %86 = arith.addf %85, %84 : vector<2x32xf32>
    %87 = arith.divf %85, %86 : vector<2x32xf32>
    %88 = vector.extract_strided_slice %81 {offsets = [0, 32], sizes = [2, 32], strides = [1, 1]} : vector<2x96xf32> to vector<2x32xf32>
    %89 = arith.negf %88 : vector<2x32xf32>
    %90 = math.exp %89 : vector<2x32xf32>
    %cst_22 = arith.constant 1.000000e+00 : f32
    %91 = vector.broadcast %cst_22 : f32 to vector<2x32xf32>
    %92 = arith.addf %91, %90 : vector<2x32xf32>
    %93 = arith.divf %91, %92 : vector<2x32xf32>
    %94 = vector.extract_strided_slice %77 {offsets = [0, 64], sizes = [2, 32], strides = [1, 1]} : vector<2x96xf32> to vector<2x32xf32>
    %95 = vector.extract_strided_slice %80 {offsets = [0, 64], sizes = [2, 32], strides = [1, 1]} : vector<2x96xf32> to vector<2x32xf32>
    %96 = arith.mulf %87, %95 : vector<2x32xf32>
    %97 = arith.addf %94, %96 : vector<2x32xf32>
    %98 = math.tanh %97 : vector<2x32xf32>
    %99 = arith.subf %68, %98 : vector<2x32xf32>
    %100 = arith.mulf %93, %99 : vector<2x32xf32>
    %101 = arith.addf %98, %100 : vector<2x32xf32>
    %c3_i32 = arith.constant 3 : i32
    %c0_23 = arith.constant 0 : index
    %102 = arith.index_cast %c3_i32 : i32 to index
    %103 = memref.load %arg0[%c0_23, %102] : memref<2x8xi32, #tpu.memory_space<smem>>
    %104 = arith.index_cast %103 : i32 to index
    %c0_24 = arith.constant 0 : index
    %105 = vector.load %arg1[%104, %c0_24] : memref<50x96xf32, #tpu.memory_space<vmem>>, vector<1x96xf32>
    %c1_25 = arith.constant 1 : index
    %106 = arith.index_cast %c3_i32 : i32 to index
    %107 = memref.load %arg0[%c1_25, %106] : memref<2x8xi32, #tpu.memory_space<smem>>
    %108 = arith.index_cast %107 : i32 to index
    %c0_26 = arith.constant 0 : index
    %109 = vector.load %arg1[%108, %c0_26] : memref<50x96xf32, #tpu.memory_space<vmem>>, vector<1x96xf32>
    %110 = tpu.concatenate %105, %109 in 0 : vector<1x96xf32>, vector<1x96xf32> -> vector<2x96xf32>
    %cst_27 = arith.constant dense<0.000000e+00> : vector<2x96xf32>
    %111 = tpu.matmul %101, %0, %cst_27 {dimension_numbers = #tpu.dot_dimension_numbers<[1], [0], [0], [1], [0, 0, 1, 1], [], []>} : vector<2x32xf32>, vector<32x96xf32>, vector<2x96xf32> -> vector<2x96xf32>
    %112 = vector.broadcast %1 : vector<1x96xf32> to vector<2x96xf32>
    %113 = arith.addf %111, %112 : vector<2x96xf32>
    %114 = arith.addf %110, %113 : vector<2x96xf32>
    %115 = vector.extract_strided_slice %114 {offsets = [0, 0], sizes = [2, 32], strides = [1, 1]} : vector<2x96xf32> to vector<2x32xf32>
    %116 = arith.negf %115 : vector<2x32xf32>
    %117 = math.exp %116 : vector<2x32xf32>
    %cst_28 = arith.constant 1.000000e+00 : f32
    %118 = vector.broadcast %cst_28 : f32 to vector<2x32xf32>
    %119 = arith.addf %118, %117 : vector<2x32xf32>
    %120 = arith.divf %118, %119 : vector<2x32xf32>
    %121 = vector.extract_strided_slice %114 {offsets = [0, 32], sizes = [2, 32], strides = [1, 1]} : vector<2x96xf32> to vector<2x32xf32>
    %122 = arith.negf %121 : vector<2x32xf32>
    %123 = math.exp %122 : vector<2x32xf32>
    %cst_29 = arith.constant 1.000000e+00 : f32
    %124 = vector.broadcast %cst_29 : f32 to vector<2x32xf32>
    %125 = arith.addf %124, %123 : vector<2x32xf32>
    %126 = arith.divf %124, %125 : vector<2x32xf32>
    %127 = vector.extract_strided_slice %110 {offsets = [0, 64], sizes = [2, 32], strides = [1, 1]} : vector<2x96xf32> to vector<2x32xf32>
    %128 = vector.extract_strided_slice %113 {offsets = [0, 64], sizes = [2, 32], strides = [1, 1]} : vector<2x96xf32> to vector<2x32xf32>
    %129 = arith.mulf %120, %128 : vector<2x32xf32>
    %130 = arith.addf %127, %129 : vector<2x32xf32>
    %131 = math.tanh %130 : vector<2x32xf32>
    %132 = arith.subf %101, %131 : vector<2x32xf32>
    %133 = arith.mulf %126, %132 : vector<2x32xf32>
    %134 = arith.addf %131, %133 : vector<2x32xf32>
    %c4_i32 = arith.constant 4 : i32
    %c0_30 = arith.constant 0 : index
    %135 = arith.index_cast %c4_i32 : i32 to index
    %136 = memref.load %arg0[%c0_30, %135] : memref<2x8xi32, #tpu.memory_space<smem>>
    %137 = arith.index_cast %136 : i32 to index
    %c0_31 = arith.constant 0 : index
    %138 = vector.load %arg1[%137, %c0_31] : memref<50x96xf32, #tpu.memory_space<vmem>>, vector<1x96xf32>
    %c1_32 = arith.constant 1 : index
    %139 = arith.index_cast %c4_i32 : i32 to index
    %140 = memref.load %arg0[%c1_32, %139] : memref<2x8xi32, #tpu.memory_space<smem>>
    %141 = arith.index_cast %140 : i32 to index
    %c0_33 = arith.constant 0 : index
    %142 = vector.load %arg1[%141, %c0_33] : memref<50x96xf32, #tpu.memory_space<vmem>>, vector<1x96xf32>
    %143 = tpu.concatenate %138, %142 in 0 : vector<1x96xf32>, vector<1x96xf32> -> vector<2x96xf32>
    %cst_34 = arith.constant dense<0.000000e+00> : vector<2x96xf32>
    %144 = tpu.matmul %134, %0, %cst_34 {dimension_numbers = #tpu.dot_dimension_numbers<[1], [0], [0], [1], [0, 0, 1, 1], [], []>} : vector<2x32xf32>, vector<32x96xf32>, vector<2x96xf32> -> vector<2x96xf32>
    %145 = vector.broadcast %1 : vector<1x96xf32> to vector<2x96xf32>
    %146 = arith.addf %144, %145 : vector<2x96xf32>
    %147 = arith.addf %143, %146 : vector<2x96xf32>
    %148 = vector.extract_strided_slice %147 {offsets = [0, 0], sizes = [2, 32], strides = [1, 1]} : vector<2x96xf32> to vector<2x32xf32>
    %149 = arith.negf %148 : vector<2x32xf32>
    %150 = math.exp %149 : vector<2x32xf32>
    %cst_35 = arith.constant 1.000000e+00 : f32
    %151 = vector.broadcast %cst_35 : f32 to vector<2x32xf32>
    %152 = arith.addf %151, %150 : vector<2x32xf32>
    %153 = arith.divf %151, %152 : vector<2x32xf32>
    %154 = vector.extract_strided_slice %147 {offsets = [0, 32], sizes = [2, 32], strides = [1, 1]} : vector<2x96xf32> to vector<2x32xf32>
    %155 = arith.negf %154 : vector<2x32xf32>
    %156 = math.exp %155 : vector<2x32xf32>
    %cst_36 = arith.constant 1.000000e+00 : f32
    %157 = vector.broadcast %cst_36 : f32 to vector<2x32xf32>
    %158 = arith.addf %157, %156 : vector<2x32xf32>
    %159 = arith.divf %157, %158 : vector<2x32xf32>
    %160 = vector.extract_strided_slice %143 {offsets = [0, 64], sizes = [2, 32], strides = [1, 1]} : vector<2x96xf32> to vector<2x32xf32>
    %161 = vector.extract_strided_slice %146 {offsets = [0, 64], sizes = [2, 32], strides = [1, 1]} : vector<2x96xf32> to vector<2x32xf32>
    %162 = arith.mulf %153, %161 : vector<2x32xf32>
    %163 = arith.addf %160, %162 : vector<2x32xf32>
    %164 = math.tanh %163 : vector<2x32xf32>
    %165 = arith.subf %134, %164 : vector<2x32xf32>
    %166 = arith.mulf %159, %165 : vector<2x32xf32>
    %167 = arith.addf %164, %166 : vector<2x32xf32>
    %c5_i32 = arith.constant 5 : i32
    %c0_37 = arith.constant 0 : index
    %168 = arith.index_cast %c5_i32 : i32 to index
    %169 = memref.load %arg0[%c0_37, %168] : memref<2x8xi32, #tpu.memory_space<smem>>
    %170 = arith.index_cast %169 : i32 to index
    %c0_38 = arith.constant 0 : index
    %171 = vector.load %arg1[%170, %c0_38] : memref<50x96xf32, #tpu.memory_space<vmem>>, vector<1x96xf32>
    %c1_39 = arith.constant 1 : index
    %172 = arith.index_cast %c5_i32 : i32 to index
    %173 = memref.load %arg0[%c1_39, %172] : memref<2x8xi32, #tpu.memory_space<smem>>
    %174 = arith.index_cast %173 : i32 to index
    %c0_40 = arith.constant 0 : index
    %175 = vector.load %arg1[%174, %c0_40] : memref<50x96xf32, #tpu.memory_space<vmem>>, vector<1x96xf32>
    %176 = tpu.concatenate %171, %175 in 0 : vector<1x96xf32>, vector<1x96xf32> -> vector<2x96xf32>
    %cst_41 = arith.constant dense<0.000000e+00> : vector<2x96xf32>
    %177 = tpu.matmul %167, %0, %cst_41 {dimension_numbers = #tpu.dot_dimension_numbers<[1], [0], [0], [1], [0, 0, 1, 1], [], []>} : vector<2x32xf32>, vector<32x96xf32>, vector<2x96xf32> -> vector<2x96xf32>
    %178 = vector.broadcast %1 : vector<1x96xf32> to vector<2x96xf32>
    %179 = arith.addf %177, %178 : vector<2x96xf32>
    %180 = arith.addf %176, %179 : vector<2x96xf32>
    %181 = vector.extract_strided_slice %180 {offsets = [0, 0], sizes = [2, 32], strides = [1, 1]} : vector<2x96xf32> to vector<2x32xf32>
    %182 = arith.negf %181 : vector<2x32xf32>
    %183 = math.exp %182 : vector<2x32xf32>
    %cst_42 = arith.constant 1.000000e+00 : f32
    %184 = vector.broadcast %cst_42 : f32 to vector<2x32xf32>
    %185 = arith.addf %184, %183 : vector<2x32xf32>
    %186 = arith.divf %184, %185 : vector<2x32xf32>
    %187 = vector.extract_strided_slice %180 {offsets = [0, 32], sizes = [2, 32], strides = [1, 1]} : vector<2x96xf32> to vector<2x32xf32>
    %188 = arith.negf %187 : vector<2x32xf32>
    %189 = math.exp %188 : vector<2x32xf32>
    %cst_43 = arith.constant 1.000000e+00 : f32
    %190 = vector.broadcast %cst_43 : f32 to vector<2x32xf32>
    %191 = arith.addf %190, %189 : vector<2x32xf32>
    %192 = arith.divf %190, %191 : vector<2x32xf32>
    %193 = vector.extract_strided_slice %176 {offsets = [0, 64], sizes = [2, 32], strides = [1, 1]} : vector<2x96xf32> to vector<2x32xf32>
    %194 = vector.extract_strided_slice %179 {offsets = [0, 64], sizes = [2, 32], strides = [1, 1]} : vector<2x96xf32> to vector<2x32xf32>
    %195 = arith.mulf %186, %194 : vector<2x32xf32>
    %196 = arith.addf %193, %195 : vector<2x32xf32>
    %197 = math.tanh %196 : vector<2x32xf32>
    %198 = arith.subf %167, %197 : vector<2x32xf32>
    %199 = arith.mulf %192, %198 : vector<2x32xf32>
    %200 = arith.addf %197, %199 : vector<2x32xf32>
    %c6_i32 = arith.constant 6 : i32
    %c0_44 = arith.constant 0 : index
    %201 = arith.index_cast %c6_i32 : i32 to index
    %202 = memref.load %arg0[%c0_44, %201] : memref<2x8xi32, #tpu.memory_space<smem>>
    %203 = arith.index_cast %202 : i32 to index
    %c0_45 = arith.constant 0 : index
    %204 = vector.load %arg1[%203, %c0_45] : memref<50x96xf32, #tpu.memory_space<vmem>>, vector<1x96xf32>
    %c1_46 = arith.constant 1 : index
    %205 = arith.index_cast %c6_i32 : i32 to index
    %206 = memref.load %arg0[%c1_46, %205] : memref<2x8xi32, #tpu.memory_space<smem>>
    %207 = arith.index_cast %206 : i32 to index
    %c0_47 = arith.constant 0 : index
    %208 = vector.load %arg1[%207, %c0_47] : memref<50x96xf32, #tpu.memory_space<vmem>>, vector<1x96xf32>
    %209 = tpu.concatenate %204, %208 in 0 : vector<1x96xf32>, vector<1x96xf32> -> vector<2x96xf32>
    %cst_48 = arith.constant dense<0.000000e+00> : vector<2x96xf32>
    %210 = tpu.matmul %200, %0, %cst_48 {dimension_numbers = #tpu.dot_dimension_numbers<[1], [0], [0], [1], [0, 0, 1, 1], [], []>} : vector<2x32xf32>, vector<32x96xf32>, vector<2x96xf32> -> vector<2x96xf32>
    %211 = vector.broadcast %1 : vector<1x96xf32> to vector<2x96xf32>
    %212 = arith.addf %210, %211 : vector<2x96xf32>
    %213 = arith.addf %209, %212 : vector<2x96xf32>
    %214 = vector.extract_strided_slice %213 {offsets = [0, 0], sizes = [2, 32], strides = [1, 1]} : vector<2x96xf32> to vector<2x32xf32>
    %215 = arith.negf %214 : vector<2x32xf32>
    %216 = math.exp %215 : vector<2x32xf32>
    %cst_49 = arith.constant 1.000000e+00 : f32
    %217 = vector.broadcast %cst_49 : f32 to vector<2x32xf32>
    %218 = arith.addf %217, %216 : vector<2x32xf32>
    %219 = arith.divf %217, %218 : vector<2x32xf32>
    %220 = vector.extract_strided_slice %213 {offsets = [0, 32], sizes = [2, 32], strides = [1, 1]} : vector<2x96xf32> to vector<2x32xf32>
    %221 = arith.negf %220 : vector<2x32xf32>
    %222 = math.exp %221 : vector<2x32xf32>
    %cst_50 = arith.constant 1.000000e+00 : f32
    %223 = vector.broadcast %cst_50 : f32 to vector<2x32xf32>
    %224 = arith.addf %223, %222 : vector<2x32xf32>
    %225 = arith.divf %223, %224 : vector<2x32xf32>
    %226 = vector.extract_strided_slice %209 {offsets = [0, 64], sizes = [2, 32], strides = [1, 1]} : vector<2x96xf32> to vector<2x32xf32>
    %227 = vector.extract_strided_slice %212 {offsets = [0, 64], sizes = [2, 32], strides = [1, 1]} : vector<2x96xf32> to vector<2x32xf32>
    %228 = arith.mulf %219, %227 : vector<2x32xf32>
    %229 = arith.addf %226, %228 : vector<2x32xf32>
    %230 = math.tanh %229 : vector<2x32xf32>
    %231 = arith.subf %200, %230 : vector<2x32xf32>
    %232 = arith.mulf %225, %231 : vector<2x32xf32>
    %233 = arith.addf %230, %232 : vector<2x32xf32>
    %c7_i32 = arith.constant 7 : i32
    %c0_51 = arith.constant 0 : index
    %234 = arith.index_cast %c7_i32 : i32 to index
    %235 = memref.load %arg0[%c0_51, %234] : memref<2x8xi32, #tpu.memory_space<smem>>
    %236 = arith.index_cast %235 : i32 to index
    %c0_52 = arith.constant 0 : index
    %237 = vector.load %arg1[%236, %c0_52] : memref<50x96xf32, #tpu.memory_space<vmem>>, vector<1x96xf32>
    %c1_53 = arith.constant 1 : index
    %238 = arith.index_cast %c7_i32 : i32 to index
    %239 = memref.load %arg0[%c1_53, %238] : memref<2x8xi32, #tpu.memory_space<smem>>
    %240 = arith.index_cast %239 : i32 to index
    %c0_54 = arith.constant 0 : index
    %241 = vector.load %arg1[%240, %c0_54] : memref<50x96xf32, #tpu.memory_space<vmem>>, vector<1x96xf32>
    %242 = tpu.concatenate %237, %241 in 0 : vector<1x96xf32>, vector<1x96xf32> -> vector<2x96xf32>
    %cst_55 = arith.constant dense<0.000000e+00> : vector<2x96xf32>
    %243 = tpu.matmul %233, %0, %cst_55 {dimension_numbers = #tpu.dot_dimension_numbers<[1], [0], [0], [1], [0, 0, 1, 1], [], []>} : vector<2x32xf32>, vector<32x96xf32>, vector<2x96xf32> -> vector<2x96xf32>
    %244 = vector.broadcast %1 : vector<1x96xf32> to vector<2x96xf32>
    %245 = arith.addf %243, %244 : vector<2x96xf32>
    %246 = arith.addf %242, %245 : vector<2x96xf32>
    %247 = vector.extract_strided_slice %246 {offsets = [0, 0], sizes = [2, 32], strides = [1, 1]} : vector<2x96xf32> to vector<2x32xf32>
    %248 = arith.negf %247 : vector<2x32xf32>
    %249 = math.exp %248 : vector<2x32xf32>
    %cst_56 = arith.constant 1.000000e+00 : f32
    %250 = vector.broadcast %cst_56 : f32 to vector<2x32xf32>
    %251 = arith.addf %250, %249 : vector<2x32xf32>
    %252 = arith.divf %250, %251 : vector<2x32xf32>
    %253 = vector.extract_strided_slice %246 {offsets = [0, 32], sizes = [2, 32], strides = [1, 1]} : vector<2x96xf32> to vector<2x32xf32>
    %254 = arith.negf %253 : vector<2x32xf32>
    %255 = math.exp %254 : vector<2x32xf32>
    %cst_57 = arith.constant 1.000000e+00 : f32
    %256 = vector.broadcast %cst_57 : f32 to vector<2x32xf32>
    %257 = arith.addf %256, %255 : vector<2x32xf32>
    %258 = arith.divf %256, %257 : vector<2x32xf32>
    %259 = vector.extract_strided_slice %242 {offsets = [0, 64], sizes = [2, 32], strides = [1, 1]} : vector<2x96xf32> to vector<2x32xf32>
    %260 = vector.extract_strided_slice %245 {offsets = [0, 64], sizes = [2, 32], strides = [1, 1]} : vector<2x96xf32> to vector<2x32xf32>
    %261 = arith.mulf %252, %260 : vector<2x32xf32>
    %262 = arith.addf %259, %261 : vector<2x32xf32>
    %263 = math.tanh %262 : vector<2x32xf32>
    %264 = arith.subf %233, %263 : vector<2x32xf32>
    %265 = arith.mulf %258, %264 : vector<2x32xf32>
    %266 = arith.addf %263, %265 : vector<2x32xf32>
    %c8_i32 = arith.constant 8 : i32
    %c0_58 = arith.constant 0 : index
    %c0_59 = arith.constant 0 : index
    %267 = vector.load %arg4[%c0_58, %c0_59] : memref<2x32xf32, #tpu.memory_space<vmem>>, vector<2x32xf32>
    tpu.vector_store %arg4[%c0_58, %c0_59], %266 {strides = array<i32>} : memref<2x32xf32, #tpu.memory_space<vmem>>, vector<2x32xf32>,
    return
  }
}

</mosaic_0001>

<llo_original>
// kernel: tpu_custom_call.1
$region0: #{tpu_custom_call.1}
  #allocation0 [shape = 'u32[]', space=smem, size = 0x4, offset = 0x4, fixed_abs, tag = 'smem constant byte address 0x4 - core index']
  #allocation1 [shape = 'u32[144,128]{1,0:T(1,128)}', space=vmem, size = 0x12000, scoped, tag = 'internal scratch']
  %s0 = inlined_call_operand.hbm [shape: s32[2,8], index: 0, kind: input, shape index: {}]
  %s1 = inlined_call_operand.hbm [shape: f32[50,96], index: 1, kind: input, shape index: {}]
  %s2 = inlined_call_operand.hbm [shape: f32[32,96], index: 2, kind: input, shape index: {}]
  %s3 = inlined_call_operand.vmem [shape: f32[1,96], index: 3, kind: input, shape index: {}]
  %s4 = inlined_call_operand.hbm [shape: f32[2,32], index: 4, kind: output, shape index: {}]
  %s5 = sld [smem:[#allocation0]]
  $region38: #{tpu_custom_call.1} parent=0
    _
  %s7 = ssub.s32 1, %s5
  %s8 = scalar_select 0, %s7, %s5
  $region1: #{tpu_custom_call.1} parent=0
    #allocation2 [shape = 'u8[1024]{0}', space=smem, size = 0x400, scoped, tag = 'input window, operand 0, single buffered']
    #allocation3 [shape = 's32[1]{0}', space=sflag, size = 0x4, scoped, tag = 'scoped memory for tpu_custom_call.1']
    #allocation4 [shape = 's32[1]{0}', space=sflag, size = 0x4, scoped, tag = 'scoped memory for tpu_custom_call.1']
    #allocation5 [shape = 's32[1]{0}', space=sflag, size = 0x4, scoped, tag = 'scoped memory for tpu_custom_call.1']
    #allocation6 [shape = 'u8[28672]{0}', space=vmem, size = 0x7000, scoped, tag = 'input window, operand 1, single buffered']
    #allocation7 [shape = 'u8[16384]{0}', space=vmem, size = 0x4000, scoped, tag = 'input window, operand 2, single buffered']
    #allocation8 [shape = 's32[1]{0}', space=sflag, size = 0x4, scoped, tag = 'scoped memory for tpu_custom_call.1']
    #allocation9 [shape = 'u8[1024]{0}', space=vmem, size = 0x400, scoped, tag = 'output window, operand 0, single buffered']
    %9 = vsyncpa [#allocation5], 0
    %10 = vsyncpa [#allocation3], 0
    %11 = vsyncpa [#allocation8], 0
    %12 = vsyncpa [#allocation4], 0
    // Predicated region
    $region2: #{tpu_custom_call.1} parent=1 // pred_check
      _
    $region3: #{tpu_custom_call.1} parent=1 // pred_check_branch
      %14 = sbr.rel (0) target = $region5
    $region4: #{tpu_custom_call.1} parent=1 // pred_region
      %s16 = ssub.s32 32, 32
      %17 = vsyncadd [#allocation5], %s16
      %20 = dma.hbm_to_smem %s0, 32, [#allocation2], [#allocation5]
    $region5: #{tpu_custom_call.1} parent=1 // pred_fallthru
      _
    // Predicated region
    $region6: #{tpu_custom_call.1} parent=1 // pred_check
      _
    $region7: #{tpu_custom_call.1} parent=1 // pred_check_branch
      %22 = sbr.rel (0) target = $region9
    $region8: #{tpu_custom_call.1} parent=1 // pred_region
      %s24 = ssub.s32 896, 896
      %25 = vsyncadd [#allocation3], %s24
      %s26 = sshll.u32 [#allocation6], 4
      %s27 = int_to_ptr.vmem [resolvable:$true] %s26
      %32 = dma.hbm_to_vmem [thread:$0]  %s1, 896, %s27, [#allocation3], 128, 128, 8
    $region9: #{tpu_custom_call.1} parent=1 // pred_fallthru
      _
    // Predicated region
    $region10: #{tpu_custom_call.1} parent=1 // pred_check
      _
    $region11: #{tpu_custom_call.1} parent=1 // pred_check_branch
      %34 = sbr.rel (0) target = $region13
    $region12: #{tpu_custom_call.1} parent=1 // pred_region
      %s36 = ssub.s32 512, 512
      %37 = vsyncadd [#allocation8], %s36
      %s38 = sshll.u32 [#allocation7], 4
      %s39 = int_to_ptr.vmem [resolvable:$true] %s38
      %44 = dma.hbm_to_vmem [thread:$0]  %s2, 512, %s39, [#allocation8], 128, 128, 8
    $region13: #{tpu_custom_call.1} parent=1 // pred_fallthru
      _
    // Predicated region
    $region14: #{tpu_custom_call.1} parent=1 // pred_check
      _
    $region15: #{tpu_custom_call.1} parent=1 // pred_check_branch
      %46 = sbr.rel (0) target = $region17
    $region16: #{tpu_custom_call.1} parent=1 // pred_region
      _
    $region17: #{tpu_custom_call.1} parent=1 // pred_fallthru
      _
    // Predicated region
    $region18: #{tpu_custom_call.1} parent=1 // pred_check
      _
    $region19: #{tpu_custom_call.1} parent=1 // pred_check_branch
      %48 = sbr.rel (0) target = $region21
    $region20: #{tpu_custom_call.1} parent=1 // pred_region
      %49 = dma.done [#allocation5], 32
    $region21: #{tpu_custom_call.1} parent=1 // pred_fallthru
      _
    // Predicated region
    $region22: #{tpu_custom_call.1} parent=1 // pred_check
      _
    $region23: #{tpu_custom_call.1} parent=1 // pred_check_branch
      %51 = sbr.rel (0) target = $region25
    $region24: #{tpu_custom_call.1} parent=1 // pred_region
      %52 = dma.done [#allocation3], 896
    $region25: #{tpu_custom_call.1} parent=1 // pred_fallthru
      _
    // Predicated region
    $region26: #{tpu_custom_call.1} parent=1 // pred_check
      _
    $region27: #{tpu_custom_call.1} parent=1 // pred_check_branch
      %54 = sbr.rel (0) target = $region29
    $region28: #{tpu_custom_call.1} parent=1 // pred_region
      %55 = dma.done [#allocation8], 512
    $region29: #{tpu_custom_call.1} parent=1 // pred_fallthru
      _
    %56 = sfence
    %v57 = vld [vmem:[#allocation7] sm:$0xff]
    %v58 = vld [vmem:[#allocation7 + $0x8] sm:$0xff]
    %v59 = vld [vmem:[#allocation7 + $0x10] sm:$0xff]
    %v60 = vld [vmem:[#allocation7 + $0x18] sm:$0xff]
    %v61 = vld [vmem:[%s3] sm:$0x1]
    %s62 = sld [smem:[#allocation2]]
    %s63 = scalar_lea.vmem [#allocation6], %s62
    %v64 = vld [vmem:[%s63] sm:$0x1]
    %s65 = sld [smem:[#allocation2 + $0x80]]
    %s66 = scalar_lea.vmem [#allocation6], %s65
    %v67 = vld [vmem:[%s66] sm:$0x1]
    %v69 = vrot.slane %v67, 7
    %vm71 = vcmask 1040384
    %v72 = vsel %vm71, %v64, %v69
    %v74 = vlaneseq
    %v75 = vshrl.u32 %v74, 7
    %v76 = vsub.s32 0, %v75
    %v77 = vrot.slane %v61, %v76
    %vm79 = vcmask 261120
    %v81 = vsel %vm79, 0.0, 0
    %83 = vmatprep.subr.mxu0 0.0
    %84 = vmatpush1.msra.mxu0 %v57
    %85 = vmatprep.subr.mxu0 0.0
    %86 = vmatpush1.msra.mxu0 %v58
    %87 = vmatprep.subr.mxu0 0.0
    %88 = vmatpush1.msra.mxu0 %v59
    %89 = vmatprep.subr.mxu0 0.0
    %90 = vmatpush1.msra.mxu0 %v60
    %91 = vmatprep.subr.mxu0 0.0
    %92 = vmatpush1.msra.mxu0 0.0
    %93 = vmatprep.subr.mxu0 0.0
    %94 = vmatpush1.msra.mxu0 0.0
    %95 = vmatprep.subr.mxu0 0.0
    %96 = vmatpush1.msra.mxu0 0.0
    %97 = vmatprep.subr.mxu0 0.0
    %98 = vmatpush1.msra.mxu0 0.0
    %99 = vmatprep.subr.mxu0 0.0
    %100 = vmatpush1.msra.mxu0 0.0
    %101 = vmatprep.subr.mxu0 0.0
    %102 = vmatpush1.msra.mxu0 0.0
    %103 = vmatprep.subr.mxu0 0.0
    %104 = vmatpush1.msra.mxu0 0.0
    %105 = vmatprep.subr.mxu0 0.0
    %106 = vmatpush1.msra.mxu0 0.0
    %107 = vmatprep.subr.mxu0 0.0
    %108 = vmatpush1.msra.mxu0 0.0
    %109 = vmatprep.subr.mxu0 0.0
    %110 = vmatpush1.msra.mxu0 0.0
    %111 = vmatprep.subr.mxu0 0.0
    %112 = vmatpush1.msra.mxu0 0.0
    %113 = vmatprep.subr.mxu0 0.0
    %114 = vmatpush1.msra.mxu0 0.0
    %115 = vmatprep.subr.mxu0 0.0
    %116 = vmatpush1.msra.mxu0 0.0
    %117 = vmatprep.subr.mxu0 0.0
    %118 = vmatpush1.msra.mxu0 0.0
    %119 = vmatprep.subr.mxu0 0.0
    %120 = vmatpush1.msra.mxu0 0.0
    %121 = vmatprep.subr.mxu0 0.0
    %122 = vmatpush1.msra.mxu0 0.0
    %123 = vmatprep.subr.mxu0 0.0
    %124 = vmatpush1.msra.mxu0 0.0
    %125 = vmatprep.subr.mxu0 0.0
    %126 = vmatpush1.msra.mxu0 0.0
    %127 = vmatprep.subr.mxu0 0.0
    %128 = vmatpush1.msra.mxu0 0.0
    %129 = vmatprep.subr.mxu0 0.0
    %130 = vmatpush1.msra.mxu0 0.0
    %131 = vmatprep.subr.mxu0 0.0
    %132 = vmatpush1.msra.mxu0 0.0
    %133 = vmatprep.subr.mxu0 0.0
    %134 = vmatpush1.msra.mxu0 0.0
    %135 = vmatprep.subr.mxu0 0.0
    %136 = vmatpush1.msra.mxu0 0.0
    %137 = vmatprep.subr.mxu0 0.0
    %138 = vmatpush1.msra.mxu0 0.0
    %139 = vmatprep.subr.mxu0 0.0
    %140 = vmatpush1.msra.mxu0 0.0
    %141 = vmatprep.subr.mxu0 0.0
    %142 = vmatpush1.msra.mxu0 0.0
    %143 = vmatprep.subr.mxu0 0.0
    %144 = vmatpush1.msra.mxu0 0.0
    %145 = vmatprep.subr.mxu0 0.0
    %146 = vmatpush1.msra.mxu0 0.0
    %147 = vmatprep.mubr.f32.mxu0 0.0
    %148 = vmatmul.mubr.f32.gmra.mrb[0].mxu0 %v81
    %v149 = vpop.f32.mrb[0].mxu0
    %v150 = vadd.f32 %v77, %v149
    %v151 = vpop.f32.mrb[0].mxu0
    %152 = vdwg.mxu0
    %v153 = vadd.f32 %v72, %v150
    %v154 = vxor.u32 %v153, 2147483648
    %v155 = vmul.f32 %v154, 1.442695
    %v156 = vpow.pop %v155
    %v157 = vadd.f32 %v156, 1.0
    %v158 = vrcp.pop %v157
    %v159 = vmul.f32 1.0, %v158
    %161 = vrot.lane.b32.xlu0 %v150, 64
    %v162 = vpop.permute.xlu0 %161
    %v164 = vmul.f32 %v159, %v162
    %166 = vrot.lane.b32.xlu0 %v164, 64
    %v167 = vpop.permute.xlu0 %166
    %v169 = vadd.f32 %v72, %v167
    %v170 = vtanh.pop %v169
    %v171 = vsub.f32 0.0, %v170
    %173 = vrot.lane.b32.xlu0 %v171, 96
    %v174 = vpop.permute.xlu0 %173
    %v176 = vmul.f32 %v159, %v174
    %178 = vrot.lane.b32.xlu0 %v176, 32
    %v179 = vpop.permute.xlu0 %178
    %v181 = vadd.f32 %v170, %v179
    %s182 = sld [smem:[#allocation2 + $0x1]]
    %s183 = scalar_lea.vmem [#allocation6], %s182
    %v184 = vld [vmem:[%s183] sm:$0x1]
    %s185 = sld [smem:[#allocation2 + $0x81]]
    %s186 = scalar_lea.vmem [#allocation6], %s185
    %v187 = vld [vmem:[%s186] sm:$0x1]
    %v189 = vrot.slane %v187, 7
    %v191 = vsel %vm71, %v184, %v189
    %193 = vrot.lane.b32.xlu0 %v181, 64
    %v194 = vpop.permute.xlu0 %193
    %v195 = vsel %vm79, %v194, 0
    %197 = vmatprep.subr.mxu0 0.0
    %198 = vmatpush1.msra.mxu0 %v57
    %199 = vmatprep.subr.mxu0 0.0
    %200 = vmatpush1.msra.mxu0 %v58
    %201 = vmatprep.subr.mxu0 0.0
    %202 = vmatpush1.msra.mxu0 %v59
    %203 = vmatprep.subr.mxu0 0.0
    %204 = vmatpush1.msra.mxu0 %v60
    %205 = vmatprep.subr.mxu0 0.0
    %206 = vmatpush1.msra.mxu0 0.0
    %207 = vmatprep.subr.mxu0 0.0
    %208 = vmatpush1.msra.mxu0 0.0
    %209 = vmatprep.subr.mxu0 0.0
    %210 = vmatpush1.msra.mxu0 0.0
    %211 = vmatprep.subr.mxu0 0.0
    %212 = vmatpush1.msra.mxu0 0.0
    %213 = vmatprep.subr.mxu0 0.0
    %214 = vmatpush1.msra.mxu0 0.0
    %215 = vmatprep.subr.mxu0 0.0
    %216 = vmatpush1.msra.mxu0 0.0
    %217 = vmatprep.subr.mxu0 0.0
    %218 = vmatpush1.msra.mxu0 0.0
    %219 = vmatprep.subr.mxu0 0.0
    %220 = vmatpush1.msra.mxu0 0.0
    %221 = vmatprep.subr.mxu0 0.0
    %222 = vmatpush1.msra.mxu0 0.0
    %223 = vmatprep.subr.mxu0 0.0
    %224 = vmatpush1.msra.mxu0 0.0
    %225 = vmatprep.subr.mxu0 0.0
    %226 = vmatpush1.msra.mxu0 0.0
    %227 = vmatprep.subr.mxu0 0.0
    %228 = vmatpush1.msra.mxu0 0.0
    %229 = vmatprep.subr.mxu0 0.0
    %230 = vmatpush1.msra.mxu0 0.0
    %231 = vmatprep.subr.mxu0 0.0
    %232 = vmatpush1.msra.mxu0 0.0
    %233 = vmatprep.subr.mxu0 0.0
    %234 = vmatpush1.msra.mxu0 0.0
    %235 = vmatprep.subr.mxu0 0.0
    %236 = vmatpush1.msra.mxu0 0.0
    %237 = vmatprep.subr.mxu0 0.0
    %238 = vmatpush1.msra.mxu0 0.0
    %239 = vmatprep.subr.mxu0 0.0
    %240 = vmatpush1.msra.mxu0 0.0
    %241 = vmatprep.subr.mxu0 0.0
    %242 = vmatpush1.msra.mxu0 0.0
    %243 = vmatprep.subr.mxu0 0.0
    %244 = vmatpush1.msra.mxu0 0.0
    %245 = vmatprep.subr.mxu0 0.0
    %246 = vmatpush1.msra.mxu0 0.0
    %247 = vmatprep.subr.mxu0 0.0
    %248 = vmatpush1.msra.mxu0 0.0
    %249 = vmatprep.subr.mxu0 0.0
    %250 = vmatpush1.msra.mxu0 0.0
    %251 = vmatprep.subr.mxu0 0.0
    %252 = vmatpush1.msra.mxu0 0.0
    %253 = vmatprep.subr.mxu0 0.0
    %254 = vmatpush1.msra.mxu0 0.0
    %255 = vmatprep.subr.mxu0 0.0
    %256 = vmatpush1.msra.mxu0 0.0
    %257 = vmatprep.subr.mxu0 0.0
    %258 = vmatpush1.msra.mxu0 0.0
    %259 = vmatprep.subr.mxu0 0.0
    %260 = vmatpush1.msra.mxu0 0.0
    %261 = vmatprep.mubr.f32.mxu0 0.0
    %262 = vmatmul.mubr.f32.gmra.mrb[0].mxu0 %v195
    %v263 = vpop.f32.mrb[0].mxu0
    %v264 = vadd.f32 %v77, %v263
    %v265 = vpop.f32.mrb[0].mxu0
    %266 = vdwg.mxu0
    %v267 = vadd.f32 %v191, %v264
    %v268 = vxor.u32 %v267, 2147483648
    %v269 = vmul.f32 %v268, 1.442695
    %v270 = vpow.pop %v269
    %v271 = vadd.f32 %v270, 1.0
    %v272 = vrcp.pop %v271
    %v273 = vmul.f32 1.0, %v272
    %275 = vrot.lane.b32.xlu0 %v264, 64
    %v276 = vpop.permute.xlu0 %275
    %v278 = vmul.f32 %v273, %v276
    %280 = vrot.lane.b32.xlu0 %v278, 64
    %v281 = vpop.permute.xlu0 %280
    %v283 = vadd.f32 %v191, %v281
    %v284 = vtanh.pop %v283
    %v285 = vsub.f32 %v181, %v284
    %287 = vrot.lane.b32.xlu0 %v285, 96
    %v288 = vpop.permute.xlu0 %287
    %v290 = vmul.f32 %v273, %v288
    %292 = vrot.lane.b32.xlu0 %v290, 32
    %v293 = vpop.permute.xlu0 %292
    %v295 = vadd.f32 %v284, %v293
    %s296 = sld [smem:[#allocation2 + $0x2]]
    %s297 = scalar_lea.vmem [#allocation6], %s296
    %v298 = vld [vmem:[%s297] sm:$0x1]
    %s299 = sld [smem:[#allocation2 + $0x82]]
    %s300 = scalar_lea.vmem [#allocation6], %s299
    %v301 = vld [vmem:[%s300] sm:$0x1]
    %v303 = vrot.slane %v301, 7
    %v305 = vsel %vm71, %v298, %v303
    %307 = vrot.lane.b32.xlu0 %v295, 64
    %v308 = vpop.permute.xlu0 %307
    %v309 = vsel %vm79, %v308, 0
    %311 = vmatprep.subr.mxu0 0.0
    %312 = vmatpush1.msra.mxu0 %v57
    %313 = vmatprep.subr.mxu0 0.0
    %314 = vmatpush1.msra.mxu0 %v58
    %315 = vmatprep.subr.mxu0 0.0
    %316 = vmatpush1.msra.mxu0 %v59
    %317 = vmatprep.subr.mxu0 0.0
    %318 = vmatpush1.msra.mxu0 %v60
    %319 = vmatprep.subr.mxu0 0.0
    %320 = vmatpush1.msra.mxu0 0.0
    %321 = vmatprep.subr.mxu0 0.0
    %322 = vmatpush1.msra.mxu0 0.0
    %323 = vmatprep.subr.mxu0 0.0
    %324 = vmatpush1.msra.mxu0 0.0
    %325 = vmatprep.subr.mxu0 0.0
    %326 = vmatpush1.msra.mxu0 0.0
    %327 = vmatprep.subr.mxu0 0.0
    %328 = vmatpush1.msra.mxu0 0.0
    %329 = vmatprep.subr.mxu0 0.0
    %330 = vmatpush1.msra.mxu0 0.0
    %331 = vmatprep.subr.mxu0 0.0
    %332 = vmatpush1.msra.mxu0 0.0
    %333 = vmatprep.subr.mxu0 0.0
    %334 = vmatpush1.msra.mxu0 0.0
    %335 = vmatprep.subr.mxu0 0.0
    %336 = vmatpush1.msra.mxu0 0.0
    %337 = vmatprep.subr.mxu0 0.0
    %338 = vmatpush1.msra.mxu0 0.0
    %339 = vmatprep.subr.mxu0 0.0
    %340 = vmatpush1.msra.mxu0 0.0
    %341 = vmatprep.subr.mxu0 0.0
    %342 = vmatpush1.msra.mxu0 0.0
    %343 = vmatprep.subr.mxu0 0.0
    %344 = vmatpush1.msra.mxu0 0.0
    %345 = vmatprep.subr.mxu0 0.0
    %346 = vmatpush1.msra.mxu0 0.0
    %347 = vmatprep.subr.mxu0 0.0
    %348 = vmatpush1.msra.mxu0 0.0
    %349 = vmatprep.subr.mxu0 0.0
    %350 = vmatpush1.msra.mxu0 0.0
    %351 = vmatprep.subr.mxu0 0.0
    %352 = vmatpush1.msra.mxu0 0.0
    %353 = vmatprep.subr.mxu0 0.0
    %354 = vmatpush1.msra.mxu0 0.0
    %355 = vmatprep.subr.mxu0 0.0
    %356 = vmatpush1.msra.mxu0 0.0
    %357 = vmatprep.subr.mxu0 0.0
    %358 = vmatpush1.msra.mxu0 0.0
    %359 = vmatprep.subr.mxu0 0.0
    %360 = vmatpush1.msra.mxu0 0.0
    %361 = vmatprep.subr.mxu0 0.0
    %362 = vmatpush1.msra.mxu0 0.0
    %363 = vmatprep.subr.mxu0 0.0
    %364 = vmatpush1.msra.mxu0 0.0
    %365 = vmatprep.subr.mxu0 0.0
    %366 = vmatpush1.msra.mxu0 0.0
    %367 = vmatprep.subr.mxu0 0.0
    %368 = vmatpush1.msra.mxu0 0.0
    %369 = vmatprep.subr.mxu0 0.0
    %370 = vmatpush1.msra.mxu0 0.0
    %371 = vmatprep.subr.mxu0 0.0
    %372 = vmatpush1.msra.mxu0 0.0
    %373 = vmatprep.subr.mxu0 0.0
    %374 = vmatpush1.msra.mxu0 0.0
    %375 = vmatprep.mubr.f32.mxu0 0.0
    %376 = vmatmul.mubr.f32.gmra.mrb[0].mxu0 %v309
    %v377 = vpop.f32.mrb[0].mxu0
    %v378 = vadd.f32 %v77, %v377
    %v379 = vpop.f32.mrb[0].mxu0
    %380 = vdwg.mxu0
    %v381 = vadd.f32 %v305, %v378
    %v382 = vxor.u32 %v381, 2147483648
    %v383 = vmul.f32 %v382, 1.442695
    %v384 = vpow.pop %v383
    %v385 = vadd.f32 %v384, 1.0
    %v386 = vrcp.pop %v385
    %v387 = vmul.f32 1.0, %v386
    %389 = vrot.lane.b32.xlu0 %v378, 64
    %v390 = vpop.permute.xlu0 %389
    %v392 = vmul.f32 %v387, %v390
    %394 = vrot.lane.b32.xlu0 %v392, 64
    %v395 = vpop.permute.xlu0 %394
    %v397 = vadd.f32 %v305, %v395
    %v398 = vtanh.pop %v397
    %v399 = vsub.f32 %v295, %v398
    %401 = vrot.lane.b32.xlu0 %v399, 96
    %v402 = vpop.permute.xlu0 %401
    %v404 = vmul.f32 %v387, %v402
    %406 = vrot.lane.b32.xlu0 %v404, 32
    %v407 = vpop.permute.xlu0 %406
    %v409 = vadd.f32 %v398, %v407
    %s410 = sld [smem:[#allocation2 + $0x3]]
    %s411 = scalar_lea.vmem [#allocation6], %s410
    %v412 = vld [vmem:[%s411] sm:$0x1]
    %s413 = sld [smem:[#allocation2 + $0x83]]
    %s414 = scalar_lea.vmem [#allocation6], %s413
    %v415 = vld [vmem:[%s414] sm:$0x1]
    %v417 = vrot.slane %v415, 7
    %v419 = vsel %vm71, %v412, %v417
    %421 = vrot.lane.b32.xlu0 %v409, 64
    %v422 = vpop.permute.xlu0 %421
    %v423 = vsel %vm79, %v422, 0
    %425 = vmatprep.subr.mxu0 0.0
    %426 = vmatpush1.msra.mxu0 %v57
    %427 = vmatprep.subr.mxu0 0.0
    %428 = vmatpush1.msra.mxu0 %v58
    %429 = vmatprep.subr.mxu0 0.0
    %430 = vmatpush1.msra.mxu0 %v59
    %431 = vmatprep.subr.mxu0 0.0
    %432 = vmatpush1.msra.mxu0 %v60
    %433 = vmatprep.subr.mxu0 0.0
    %434 = vmatpush1.msra.mxu0 0.0
    %435 = vmatprep.subr.mxu0 0.0
    %436 = vmatpush1.msra.mxu0 0.0
    %437 = vmatprep.subr.mxu0 0.0
    %438 = vmatpush1.msra.mxu0 0.0
    %439 = vmatprep.subr.mxu0 0.0
    %440 = vmatpush1.msra.mxu0 0.0
    %441 = vmatprep.subr.mxu0 0.0
    %442 = vmatpush1.msra.mxu0 0.0
    %443 = vmatprep.subr.mxu0 0.0
    %444 = vmatpush1.msra.mxu0 0.0
    %445 = vmatprep.subr.mxu0 0.0
    %446 = vmatpush1.msra.mxu0 0.0
    %447 = vmatprep.subr.mxu0 0.0
    %448 = vmatpush1.msra.mxu0 0.0
    %449 = vmatprep.subr.mxu0 0.0
    %450 = vmatpush1.msra.mxu0 0.0
    %451 = vmatprep.subr.mxu0 0.0
    %452 = vmatpush1.msra.mxu0 0.0
    %453 = vmatprep.subr.mxu0 0.0
    %454 = vmatpush1.msra.mxu0 0.0
    %455 = vmatprep.subr.mxu0 0.0
    %456 = vmatpush1.msra.mxu0 0.0
    %457 = vmatprep.subr.mxu0 0.0
    %458 = vmatpush1.msra.mxu0 0.0
    %459 = vmatprep.subr.mxu0 0.0
    %460 = vmatpush1.msra.mxu0 0.0
    %461 = vmatprep.subr.mxu0 0.0
    %462 = vmatpush1.msra.mxu0 0.0
    %463 = vmatprep.subr.mxu0 0.0
    %464 = vmatpush1.msra.mxu0 0.0
    %465 = vmatprep.subr.mxu0 0.0
    %466 = vmatpush1.msra.mxu0 0.0
    %467 = vmatprep.subr.mxu0 0.0
    %468 = vmatpush1.msra.mxu0 0.0
    %469 = vmatprep.subr.mxu0 0.0
    %470 = vmatpush1.msra.mxu0 0.0
    %471 = vmatprep.subr.mxu0 0.0
    %472 = vmatpush1.msra.mxu0 0.0
    %473 = vmatprep.subr.mxu0 0.0
    %474 = vmatpush1.msra.mxu0 0.0
    %475 = vmatprep.subr.mxu0 0.0
    %476 = vmatpush1.msra.mxu0 0.0
    %477 = vmatprep.subr.mxu0 0.0
    %478 = vmatpush1.msra.mxu0 0.0
    %479 = vmatprep.subr.mxu0 0.0
    %480 = vmatpush1.msra.mxu0 0.0
    %481 = vmatprep.subr.mxu0 0.0
    %482 = vmatpush1.msra.mxu0 0.0
    %483 = vmatprep.subr.mxu0 0.0
    %484 = vmatpush1.msra.mxu0 0.0
    %485 = vmatprep.subr.mxu0 0.0
    %486 = vmatpush1.msra.mxu0 0.0
    %487 = vmatprep.subr.mxu0 0.0
    %488 = vmatpush1.msra.mxu0 0.0
    %489 = vmatprep.mubr.f32.mxu0 0.0
    %490 = vmatmul.mubr.f32.gmra.mrb[0].mxu0 %v423
    %v491 = vpop.f32.mrb[0].mxu0
    %v492 = vadd.f32 %v77, %v491
    %v493 = vpop.f32.mrb[0].mxu0
    %494 = vdwg.mxu0
    %v495 = vadd.f32 %v419, %v492
    %v496 = vxor.u32 %v495, 2147483648
    %v497 = vmul.f32 %v496, 1.442695
    %v498 = vpow.pop %v497
    %v499 = vadd.f32 %v498, 1.0
    %v500 = vrcp.pop %v499
    %v501 = vmul.f32 1.0, %v500
    %503 = vrot.lane.b32.xlu0 %v492, 64
    %v504 = vpop.permute.xlu0 %503
    %v506 = vmul.f32 %v501, %v504
    %508 = vrot.lane.b32.xlu0 %v506, 64
    %v509 = vpop.permute.xlu0 %508
    %v511 = vadd.f32 %v419, %v509
    %v512 = vtanh.pop %v511
    %v513 = vsub.f32 %v409, %v512
    %515 = vrot.lane.b32.xlu0 %v513, 96
    %v516 = vpop.permute.xlu0 %515
    %v518 = vmul.f32 %v501, %v516
    %520 = vrot.lane.b32.xlu0 %v518, 32
    %v521 = vpop.permute.xlu0 %520
    %v523 = vadd.f32 %v512, %v521
    %s524 = sld [smem:[#allocation2 + $0x4]]
    %s525 = scalar_lea.vmem [#allocation6], %s524
    %v526 = vld [vmem:[%s525] sm:$0x1]
    %s527 = sld [smem:[#allocation2 + $0x84]]
    %s528 = scalar_lea.vmem [#allocation6], %s527
    %v529 = vld [vmem:[%s528] sm:$0x1]
    %v531 = vrot.slane %v529, 7
    %v533 = vsel %vm71, %v526, %v531
    %535 = vrot.lane.b32.xlu0 %v523, 64
    %v536 = vpop.permute.xlu0 %535
    %v537 = vsel %vm79, %v536, 0
    %539 = vmatprep.subr.mxu0 0.0
    %540 = vmatpush1.msra.mxu0 %v57
    %541 = vmatprep.subr.mxu0 0.0
    %542 = vmatpush1.msra.mxu0 %v58
    %543 = vmatprep.subr.mxu0 0.0
    %544 = vmatpush1.msra.mxu0 %v59
    %545 = vmatprep.subr.mxu0 0.0
    %546 = vmatpush1.msra.mxu0 %v60
    %547 = vmatprep.subr.mxu0 0.0
    %548 = vmatpush1.msra.mxu0 0.0
    %549 = vmatprep.subr.mxu0 0.0
    %550 = vmatpush1.msra.mxu0 0.0
    %551 = vmatprep.subr.mxu0 0.0
    %552 = vmatpush1.msra.mxu0 0.0
    %553 = vmatprep.subr.mxu0 0.0
    %554 = vmatpush1.msra.mxu0 0.0
    %555 = vmatprep.subr.mxu0 0.0
    %556 = vmatpush1.msra.mxu0 0.0
    %557 = vmatprep.subr.mxu0 0.0
    %558 = vmatpush1.msra.mxu0 0.0
    %559 = vmatprep.subr.mxu0 0.0
    %560 = vmatpush1.msra.mxu0 0.0
    %561 = vmatprep.subr.mxu0 0.0
    %562 = vmatpush1.msra.mxu0 0.0
    %563 = vmatprep.subr.mxu0 0.0
    %564 = vmatpush1.msra.mxu0 0.0
    %565 = vmatprep.subr.mxu0 0.0
    %566 = vmatpush1.msra.mxu0 0.0
    %567 = vmatprep.subr.mxu0 0.0
    %568 = vmatpush1.msra.mxu0 0.0
    %569 = vmatprep.subr.mxu0 0.0
    %570 = vmatpush1.msra.mxu0 0.0
    %571 = vmatprep.subr.mxu0 0.0
    %572 = vmatpush1.msra.mxu0 0.0
    %573 = vmatprep.subr.mxu0 0.0
    %574 = vmatpush1.msra.mxu0 0.0
    %575 = vmatprep.subr.mxu0 0.0
    %576 = vmatpush1.msra.mxu0 0.0
    %577 = vmatprep.subr.mxu0 0.0
    %578 = vmatpush1.msra.mxu0 0.0
    %579 = vmatprep.subr.mxu0 0.0
    %580 = vmatpush1.msra.mxu0 0.0
    %581 = vmatprep.subr.mxu0 0.0
    %582 = vmatpush1.msra.mxu0 0.0
    %583 = vmatprep.subr.mxu0 0.0
    %584 = vmatpush1.msra.mxu0 0.0
    %585 = vmatprep.subr.mxu0 0.0
    %586 = vmatpush1.msra.mxu0 0.0
    %587 = vmatprep.subr.mxu0 0.0
    %588 = vmatpush1.msra.mxu0 0.0
    %589 = vmatprep.subr.mxu0 0.0
    %590 = vmatpush1.msra.mxu0 0.0
    %591 = vmatprep.subr.mxu0 0.0
    %592 = vmatpush1.msra.mxu0 0.0
    %593 = vmatprep.subr.mxu0 0.0
    %594 = vmatpush1.msra.mxu0 0.0
    %595 = vmatprep.subr.mxu0 0.0
    %596 = vmatpush1.msra.mxu0 0.0
    %597 = vmatprep.subr.mxu0 0.0
    %598 = vmatpush1.msra.mxu0 0.0
    %599 = vmatprep.subr.mxu0 0.0
    %600 = vmatpush1.msra.mxu0 0.0
    %601 = vmatprep.subr.mxu0 0.0
    %602 = vmatpush1.msra.mxu0 0.0
    %603 = vmatprep.mubr.f32.mxu0 0.0
    %604 = vmatmul.mubr.f32.gmra.mrb[0].mxu0 %v537
    %v605 = vpop.f32.mrb[0].mxu0
    %v606 = vadd.f32 %v77, %v605
    %v607 = vpop.f32.mrb[0].mxu0
    %608 = vdwg.mxu0
    %v609 = vadd.f32 %v533, %v606
    %v610 = vxor.u32 %v609, 2147483648
    %v611 = vmul.f32 %v610, 1.442695
    %v612 = vpow.pop %v611
    %v613 = vadd.f32 %v612, 1.0
    %v614 = vrcp.pop %v613
    %v615 = vmul.f32 1.0, %v614
    %617 = vrot.lane.b32.xlu0 %v606, 64
    %v618 = vpop.permute.xlu0 %617
    %v620 = vmul.f32 %v615, %v618
    %622 = vrot.lane.b32.xlu0 %v620, 64
    %v623 = vpop.permute.xlu0 %622
    %v625 = vadd.f32 %v533, %v623
    %v626 = vtanh.pop %v625
    %v627 = vsub.f32 %v523, %v626
    %629 = vrot.lane.b32.xlu0 %v627, 96
    %v630 = vpop.permute.xlu0 %629
    %v632 = vmul.f32 %v615, %v630
    %634 = vrot.lane.b32.xlu0 %v632, 32
    %v635 = vpop.permute.xlu0 %634
    %v637 = vadd.f32 %v626, %v635
    %s638 = sld [smem:[#allocation2 + $0x5]]
    %s639 = scalar_lea.vmem [#allocation6], %s638
    %v640 = vld [vmem:[%s639] sm:$0x1]
    %s641 = sld [smem:[#allocation2 + $0x85]]
    %s642 = scalar_lea.vmem [#allocation6], %s641
    %v643 = vld [vmem:[%s642] sm:$0x1]
    %v645 = vrot.slane %v643, 7
    %v647 = vsel %vm71, %v640, %v645
    %649 = vrot.lane.b32.xlu0 %v637, 64
    %v650 = vpop.permute.xlu0 %649
    %v651 = vsel %vm79, %v650, 0
    %653 = vmatprep.subr.mxu0 0.0
    %654 = vmatpush1.msra.mxu0 %v57
    %655 = vmatprep.subr.mxu0 0.0
    %656 = vmatpush1.msra.mxu0 %v58
    %657 = vmatprep.subr.mxu0 0.0
    %658 = vmatpush1.msra.mxu0 %v59
    %659 = vmatprep.subr.mxu0 0.0
    %660 = vmatpush1.msra.mxu0 %v60
    %661 = vmatprep.subr.mxu0 0.0
    %662 = vmatpush1.msra.mxu0 0.0
    %663 = vmatprep.subr.mxu0 0.0
    %664 = vmatpush1.msra.mxu0 0.0
    %665 = vmatprep.subr.mxu0 0.0
    %666 = vmatpush1.msra.mxu0 0.0
    %667 = vmatprep.subr.mxu0 0.0
    %668 = vmatpush1.msra.mxu0 0.0
    %669 = vmatprep.subr.mxu0 0.0
    %670 = vmatpush1.msra.mxu0 0.0
    %671 = vmatprep.subr.mxu0 0.0
    %672 = vmatpush1.msra.mxu0 0.0
    %673 = vmatprep.subr.mxu0 0.0
    %674 = vmatpush1.msra.mxu0 0.0
    %675 = vmatprep.subr.mxu0 0.0
    %676 = vmatpush1.msra.mxu0 0.0
    %677 = vmatprep.subr.mxu0 0.0
    %678 = vmatpush1.msra.mxu0 0.0
    %679 = vmatprep.subr.mxu0 0.0
    %680 = vmatpush1.msra.mxu0 0.0
    %681 = vmatprep.subr.mxu0 0.0
    %682 = vmatpush1.msra.mxu0 0.0
    %683 = vmatprep.subr.mxu0 0.0
    %684 = vmatpush1.msra.mxu0 0.0
    %685 = vmatprep.subr.mxu0 0.0
    %686 = vmatpush1.msra.mxu0 0.0
    %687 = vmatprep.subr.mxu0 0.0
    %688 = vmatpush1.msra.mxu0 0.0
    %689 = vmatprep.subr.mxu0 0.0
    %690 = vmatpush1.msra.mxu0 0.0
    %691 = vmatprep.subr.mxu0 0.0
    %692 = vmatpush1.msra.mxu0 0.0
    %693 = vmatprep.subr.mxu0 0.0
    %694 = vmatpush1.msra.mxu0 0.0
    %695 = vmatprep.subr.mxu0 0.0
    %696 = vmatpush1.msra.mxu0 0.0
    %697 = vmatprep.subr.mxu0 0.0
    %698 = vmatpush1.msra.mxu0 0.0
    %699 = vmatprep.subr.mxu0 0.0
    %700 = vmatpush1.msra.mxu0 0.0
    %701 = vmatprep.subr.mxu0 0.0
    %702 = vmatpush1.msra.mxu0 0.0
    %703 = vmatprep.subr.mxu0 0.0
    %704 = vmatpush1.msra.mxu0 0.0
    %705 = vmatprep.subr.mxu0 0.0
    %706 = vmatpush1.msra.mxu0 0.0
    %707 = vmatprep.subr.mxu0 0.0
    %708 = vmatpush1.msra.mxu0 0.0
    %709 = vmatprep.subr.mxu0 0.0
    %710 = vmatpush1.msra.mxu0 0.0
    %711 = vmatprep.subr.mxu0 0.0
    %712 = vmatpush1.msra.mxu0 0.0
    %713 = vmatprep.subr.mxu0 0.0
    %714 = vmatpush1.msra.mxu0 0.0
    %715 = vmatprep.subr.mxu0 0.0
    %716 = vmatpush1.msra.mxu0 0.0
    %717 = vmatprep.mubr.f32.mxu0 0.0
    %718 = vmatmul.mubr.f32.gmra.mrb[0].mxu0 %v651
    %v719 = vpop.f32.mrb[0].mxu0
    %v720 = vadd.f32 %v77, %v719
    %v721 = vpop.f32.mrb[0].mxu0
    %722 = vdwg.mxu0
    %v723 = vadd.f32 %v647, %v720
    %v724 = vxor.u32 %v723, 2147483648
    %v725 = vmul.f32 %v724, 1.442695
    %v726 = vpow.pop %v725
    %v727 = vadd.f32 %v726, 1.0
    %v728 = vrcp.pop %v727
    %v729 = vmul.f32 1.0, %v728
    %731 = vrot.lane.b32.xlu0 %v720, 64
    %v732 = vpop.permute.xlu0 %731
    %v734 = vmul.f32 %v729, %v732
    %736 = vrot.lane.b32.xlu0 %v734, 64
    %v737 = vpop.permute.xlu0 %736
    %v739 = vadd.f32 %v647, %v737
    %v740 = vtanh.pop %v739
    %v741 = vsub.f32 %v637, %v740
    %743 = vrot.lane.b32.xlu0 %v741, 96
    %v744 = vpop.permute.xlu0 %743
    %v746 = vmul.f32 %v729, %v744
    %748 = vrot.lane.b32.xlu0 %v746, 32
    %v749 = vpop.permute.xlu0 %748
    %v751 = vadd.f32 %v740, %v749
    %s752 = sld [smem:[#allocation2 + $0x6]]
    %s753 = scalar_lea.vmem [#allocation6], %s752
    %v754 = vld [vmem:[%s753] sm:$0x1]
    %s755 = sld [smem:[#allocation2 + $0x86]]
    %s756 = scalar_lea.vmem [#allocation6], %s755
    %v757 = vld [vmem:[%s756] sm:$0x1]
    %v759 = vrot.slane %v757, 7
    %v761 = vsel %vm71, %v754, %v759
    %763 = vrot.lane.b32.xlu0 %v751, 64
    %v764 = vpop.permute.xlu0 %763
    %v765 = vsel %vm79, %v764, 0
    %767 = vmatprep.subr.mxu0 0.0
    %768 = vmatpush1.msra.mxu0 %v57
    %769 = vmatprep.subr.mxu0 0.0
    %770 = vmatpush1.msra.mxu0 %v58
    %771 = vmatprep.subr.mxu0 0.0
    %772 = vmatpush1.msra.mxu0 %v59
    %773 = vmatprep.subr.mxu0 0.0
    %774 = vmatpush1.msra.mxu0 %v60
    %775 = vmatprep.subr.mxu0 0.0
    %776 = vmatpush1.msra.mxu0 0.0
    %777 = vmatprep.subr.mxu0 0.0
    %778 = vmatpush1.msra.mxu0 0.0
    %779 = vmatprep.subr.mxu0 0.0
    %780 = vmatpush1.msra.mxu0 0.0
    %781 = vmatprep.subr.mxu0 0.0
    %782 = vmatpush1.msra.mxu0 0.0
    %783 = vmatprep.subr.mxu0 0.0
    %784 = vmatpush1.msra.mxu0 0.0
    %785 = vmatprep.subr.mxu0 0.0
    %786 = vmatpush1.msra.mxu0 0.0
    %787 = vmatprep.subr.mxu0 0.0
    %788 = vmatpush1.msra.mxu0 0.0
    %789 = vmatprep.subr.mxu0 0.0
    %790 = vmatpush1.msra.mxu0 0.0
    %791 = vmatprep.subr.mxu0 0.0
    %792 = vmatpush1.msra.mxu0 0.0
    %793 = vmatprep.subr.mxu0 0.0
    %794 = vmatpush1.msra.mxu0 0.0
    %795 = vmatprep.subr.mxu0 0.0
    %796 = vmatpush1.msra.mxu0 0.0
    %797 = vmatprep.subr.mxu0 0.0
    %798 = vmatpush1.msra.mxu0 0.0
    %799 = vmatprep.subr.mxu0 0.0
    %800 = vmatpush1.msra.mxu0 0.0
    %801 = vmatprep.subr.mxu0 0.0
    %802 = vmatpush1.msra.mxu0 0.0
    %803 = vmatprep.subr.mxu0 0.0
    %804 = vmatpush1.msra.mxu0 0.0
    %805 = vmatprep.subr.mxu0 0.0
    %806 = vmatpush1.msra.mxu0 0.0
    %807 = vmatprep.subr.mxu0 0.0
    %808 = vmatpush1.msra.mxu0 0.0
    %809 = vmatprep.subr.mxu0 0.0
    %810 = vmatpush1.msra.mxu0 0.0
    %811 = vmatprep.subr.mxu0 0.0
    %812 = vmatpush1.msra.mxu0 0.0
    %813 = vmatprep.subr.mxu0 0.0
    %814 = vmatpush1.msra.mxu0 0.0
    %815 = vmatprep.subr.mxu0 0.0
    %816 = vmatpush1.msra.mxu0 0.0
    %817 = vmatprep.subr.mxu0 0.0
    %818 = vmatpush1.msra.mxu0 0.0
    %819 = vmatprep.subr.mxu0 0.0
    %820 = vmatpush1.msra.mxu0 0.0
    %821 = vmatprep.subr.mxu0 0.0
    %822 = vmatpush1.msra.mxu0 0.0
    %823 = vmatprep.subr.mxu0 0.0
    %824 = vmatpush1.msra.mxu0 0.0
    %825 = vmatprep.subr.mxu0 0.0
    %826 = vmatpush1.msra.mxu0 0.0
    %827 = vmatprep.subr.mxu0 0.0
    %828 = vmatpush1.msra.mxu0 0.0
    %829 = vmatprep.subr.mxu0 0.0
    %830 = vmatpush1.msra.mxu0 0.0
    %831 = vmatprep.mubr.f32.mxu0 0.0
    %832 = vmatmul.mubr.f32.gmra.mrb[0].mxu0 %v765
    %v833 = vpop.f32.mrb[0].mxu0
    %v834 = vadd.f32 %v77, %v833
    %v835 = vpop.f32.mrb[0].mxu0
    %836 = vdwg.mxu0
    %v837 = vadd.f32 %v761, %v834
    %v838 = vxor.u32 %v837, 2147483648
    %v839 = vmul.f32 %v838, 1.442695
    %v840 = vpow.pop %v839
    %v841 = vadd.f32 %v840, 1.0
    %v842 = vrcp.pop %v841
    %v843 = vmul.f32 1.0, %v842
    %845 = vrot.lane.b32.xlu0 %v834, 64
    %v846 = vpop.permute.xlu0 %845
    %v848 = vmul.f32 %v843, %v846
    %850 = vrot.lane.b32.xlu0 %v848, 64
    %v851 = vpop.permute.xlu0 %850
    %v853 = vadd.f32 %v761, %v851
    %v854 = vtanh.pop %v853
    %v855 = vsub.f32 %v751, %v854
    %857 = vrot.lane.b32.xlu0 %v855, 96
    %v858 = vpop.permute.xlu0 %857
    %v860 = vmul.f32 %v843, %v858
    %862 = vrot.lane.b32.xlu0 %v860, 32
    %v863 = vpop.permute.xlu0 %862
    %v865 = vadd.f32 %v854, %v863
    %s866 = sld [smem:[#allocation2 + $0x7]]
    %s867 = scalar_lea.vmem [#allocation6], %s866
    %v868 = vld [vmem:[%s867] sm:$0x1]
    %s869 = sld [smem:[#allocation2 + $0x87]]
    %s870 = scalar_lea.vmem [#allocation6], %s869
    %v871 = vld [vmem:[%s870] sm:$0x1]
    %v873 = vrot.slane %v871, 7
    %v875 = vsel %vm71, %v868, %v873
    %877 = vrot.lane.b32.xlu0 %v865, 64
    %v878 = vpop.permute.xlu0 %877
    %v879 = vsel %vm79, %v878, 0
    %881 = vmatprep.subr.mxu0 0.0
    %882 = vmatpush1.msra.mxu0 %v57
    %883 = vmatprep.subr.mxu0 0.0
    %884 = vmatpush1.msra.mxu0 %v58
    %885 = vmatprep.subr.mxu0 0.0
    %886 = vmatpush1.msra.mxu0 %v59
    %887 = vmatprep.subr.mxu0 0.0
    %888 = vmatpush1.msra.mxu0 %v60
    %889 = vmatprep.subr.mxu0 0.0
    %890 = vmatpush1.msra.mxu0 0.0
    %891 = vmatprep.subr.mxu0 0.0
    %892 = vmatpush1.msra.mxu0 0.0
    %893 = vmatprep.subr.mxu0 0.0
    %894 = vmatpush1.msra.mxu0 0.0
    %895 = vmatprep.subr.mxu0 0.0
    %896 = vmatpush1.msra.mxu0 0.0
    %897 = vmatprep.subr.mxu0 0.0
    %898 = vmatpush1.msra.mxu0 0.0
    %899 = vmatprep.subr.mxu0 0.0
    %900 = vmatpush1.msra.mxu0 0.0
    %901 = vmatprep.subr.mxu0 0.0
    %902 = vmatpush1.msra.mxu0 0.0
    %903 = vmatprep.subr.mxu0 0.0
    %904 = vmatpush1.msra.mxu0 0.0
    %905 = vmatprep.subr.mxu0 0.0
    %906 = vmatpush1.msra.mxu0 0.0
    %907 = vmatprep.subr.mxu0 0.0
    %908 = vmatpush1.msra.mxu0 0.0
    %909 = vmatprep.subr.mxu0 0.0
    %910 = vmatpush1.msra.mxu0 0.0
    %911 = vmatprep.subr.mxu0 0.0
    %912 = vmatpush1.msra.mxu0 0.0
    %913 = vmatprep.subr.mxu0 0.0
    %914 = vmatpush1.msra.mxu0 0.0
    %915 = vmatprep.subr.mxu0 0.0
    %916 = vmatpush1.msra.mxu0 0.0
    %917 = vmatprep.subr.mxu0 0.0
    %918 = vmatpush1.msra.mxu0 0.0
    %919 = vmatprep.subr.mxu0 0.0
    %920 = vmatpush1.msra.mxu0 0.0
    %921 = vmatprep.subr.mxu0 0.0
    %922 = vmatpush1.msra.mxu0 0.0
    %923 = vmatprep.subr.mxu0 0.0
    %924 = vmatpush1.msra.mxu0 0.0
    %925 = vmatprep.subr.mxu0 0.0
    %926 = vmatpush1.msra.mxu0 0.0
    %927 = vmatprep.subr.mxu0 0.0
    %928 = vmatpush1.msra.mxu0 0.0
    %929 = vmatprep.subr.mxu0 0.0
    %930 = vmatpush1.msra.mxu0 0.0
    %931 = vmatprep.subr.mxu0 0.0
    %932 = vmatpush1.msra.mxu0 0.0
    %933 = vmatprep.subr.mxu0 0.0
    %934 = vmatpush1.msra.mxu0 0.0
    %935 = vmatprep.subr.mxu0 0.0
    %936 = vmatpush1.msra.mxu0 0.0
    %937 = vmatprep.subr.mxu0 0.0
    %938 = vmatpush1.msra.mxu0 0.0
    %939 = vmatprep.subr.mxu0 0.0
    %940 = vmatpush1.msra.mxu0 0.0
    %941 = vmatprep.subr.mxu0 0.0
    %942 = vmatpush1.msra.mxu0 0.0
    %943 = vmatprep.subr.mxu0 0.0
    %944 = vmatpush1.msra.mxu0 0.0
    %945 = vmatprep.mubr.f32.mxu0 0.0
    %946 = vmatmul.mubr.f32.gmra.mrb[0].mxu0 %v879
    %v947 = vpop.f32.mrb[0].mxu0
    %v948 = vadd.f32 %v77, %v947
    %v949 = vpop.f32.mrb[0].mxu0
    %950 = vdwg.mxu0
    %v951 = vadd.f32 %v875, %v948
    %v952 = vxor.u32 %v951, 2147483648
    %v953 = vmul.f32 %v952, 1.442695
    %v954 = vpow.pop %v953
    %v955 = vadd.f32 %v954, 1.0
    %v956 = vrcp.pop %v955
    %v957 = vmul.f32 1.0, %v956
    %959 = vrot.lane.b32.xlu0 %v948, 64
    %v960 = vpop.permute.xlu0 %959
    %v962 = vmul.f32 %v957, %v960
    %964 = vrot.lane.b32.xlu0 %v962, 64
    %v965 = vpop.permute.xlu0 %964
    %v967 = vadd.f32 %v875, %v965
    %v968 = vtanh.pop %v967
    %v969 = vsub.f32 %v865, %v968
    %971 = vrot.lane.b32.xlu0 %v969, 96
    %v972 = vpop.permute.xlu0 %971
    %v974 = vmul.f32 %v957, %v972
    %976 = vrot.lane.b32.xlu0 %v974, 32
    %v977 = vpop.permute.xlu0 %976
    %v979 = vadd.f32 %v968, %v977
    %981 = vrot.lane.b32.xlu0 %v979, 64
    %v982 = vpop.permute.xlu0 %981
    %vm984 = vcmask 254976
    %985 = vst.msk [vmem:[#allocation9] sm:$0x3] %vm984, %v982
    // Predicated region
    $region30: #{tpu_custom_call.1} parent=1 // pred_check
      _
    $region31: #{tpu_custom_call.1} parent=1 // pred_check_branch
      %987 = sbr.rel (0) target = $region33
    $region32: #{tpu_custom_call.1} parent=1 // pred_region
      %s989 = ssub.s32 32, 32
      %990 = vsyncadd [#allocation4], %s989
      %s992 = sshll.u32 [#allocation9], 4
      %s993 = int_to_ptr.vmem [resolvable:$true] %s992
      %995 = dma.vmem_to_hbm [thread:$0]  %s993, 32, %s4, [#allocation4]
    $region33: #{tpu_custom_call.1} parent=1 // pred_fallthru
      _
    // Predicated region
    $region34: #{tpu_custom_call.1} parent=1 // pred_check
      _
    $region35: #{tpu_custom_call.1} parent=1 // pred_check_branch
      %997 = sbr.rel (0) target = $region37
    $region36: #{tpu_custom_call.1} parent=1 // pred_region
      %998 = dma.done [#allocation4], 32
    $region37: #{tpu_custom_call.1} parent=1 // pred_fallthru
      _
    %999 = vsyncpa [#allocation3], 1
    %1000 = vsyncpa [#allocation8], 1
    %1001 = vsyncpa [#allocation4], 1
    %1002 = vsyncpa [#allocation5], 1

</llo_original>
